<compile_context>
chip_gen: v7x
topology: tpu7x:2x2x1
jax: 0.10.0
libtpu: 0.0.40
codegen_flags: <defaults>
</compile_context>

<pallas_src>
import math

import jax
import jax.numpy as jnp
from jax.experimental import pallas as pl
from jax.experimental.pallas import tpu as pltpu


def subnet_kernel(x_ref, w1_ref, b1_ref, w2_ref, b2_ref, o_ref):
    x = x_ref[...]                                              # (tm, D_in)
    # Layer 1: Linear(D_in, 128) + ReLU  (single MXU matmul, bias broadcast on VPU)
    h = jnp.dot(x, w1_ref[...], preferred_element_type=jnp.float32) + b1_ref[...]
    h = jnp.maximum(h, 0.0)                                     # (tm, 128)
    # Layer 2: Linear(128, 32) + ReLU
    y = jnp.dot(h, w2_ref[...], preferred_element_type=jnp.float32) + b2_ref[...]
    y = jnp.maximum(y, 0.0)                                     # (tm, 32)
    o_ref[...] = y.astype(o_ref.dtype)


def subnet_forward(x, params, *, block_rows=512):
    """x: (..., D_in) -> (..., 32). Dropout is inference-mode identity."""
    orig_shape = x.shape
    d_in = orig_shape[-1]
    x2 = x.reshape(-1, d_in)
    B = x2.shape[0]

    if B <= block_rows:
        # Single grid step: block == full array, no (8,128) divisibility concerns.
        tm, bp = B, B
    else:
        tm = block_rows                                  # multiple of 8
        bp = pl.cdiv(B, tm) * tm
    if bp != B:
        x2 = jnp.pad(x2, ((0, bp - B), (0, 0)))

    w1, b1 = params["w1"], params["b1"]                  # (D_in, 128), (1, 128)
    w2, b2 = params["w2"], params["b2"]                  # (128, 32),  (1, 32)
    d_hidden, d_out = w1.shape[1], w2.shape[1]

    out = pl.pallas_call(
        subnet_kernel,
        out_shape=jax.ShapeDtypeStruct((bp, d_out), jnp.float32),
        grid_spec=pltpu.PrefetchScalarGridSpec(
            num_scalar_prefetch=0,
            grid=(bp // tm,),
            in_specs=[
                # activations: tiled over batch rows
                pl.BlockSpec((tm, d_in), lambda i: (i, 0)),
                # parameters: whole array, constant index_map -> fetched once, VMEM-resident
                pl.BlockSpec((d_in, d_hidden), lambda i: (0, 0)),
                pl.BlockSpec((1, d_hidden), lambda i: (0, 0)),
                pl.BlockSpec((d_hidden, d_out), lambda i: (0, 0)),
                pl.BlockSpec((1, d_out), lambda i: (0, 0)),
            ],
            out_specs=pl.BlockSpec((tm, d_out), lambda i: (i, 0)),
        ),
        compiler_params=pltpu.CompilerParams(
            # batch-row axis is embarrassingly parallel (lets v7x's 2 TCs split it)
            dimension_semantics=("parallel",)),
    )(x2, w1, b1, w2, b2)

    out = out[:B]
    return out.reshape(orig_shape[:-1] + (d_out,))


def reference(x, params):
    # Plain-JAX re-implementation of the PyTorch forward (eval mode: dropout = identity).
    h = jnp.maximum(x @ params["w1"] + params["b1"], 0.0)
    return jnp.maximum(h @ params["w2"] + params["b2"], 0.0)


def init_params(key, input_dim):
    # PyTorch nn.Linear default init: U(-1/sqrt(fan_in), 1/sqrt(fan_in))
    ks = jax.random.split(key, 4)
    s1 = 1.0 / math.sqrt(input_dim)
    s2 = 1.0 / math.sqrt(128)
    return {
        "w1": jax.random.uniform(ks[0], (input_dim, 128), jnp.float32, -s1, s1),
        "b1": jax.random.uniform(ks[1], (1, 128), jnp.float32, -s1, s1),
        "w2": jax.random.uniform(ks[2], (128, 32), jnp.float32, -s2, s2),
        "b2": jax.random.uniform(ks[3], (1, 32), jnp.float32, -s2, s2),
    }


if __name__ == "__main__":
    B, input_dim = 8, 64

    key = jax.random.PRNGKey(0)
    kx, kp = jax.random.split(key)
    x = jax.random.normal(kx, (B, input_dim), jnp.float32)
    params = init_params(kp, input_dim)

    out = subnet_forward(x, params)
    out = jax.block_until_ready(out)

    ref = reference(x, params)
    assert out.shape == (B, 32)
    assert jnp.allclose(out, ref, atol=1e-5, rtol=1e-5)

    print("KERNEL_OK")
</pallas_src>

<mosaic_0001>
module attributes {stable_mosaic.version = 11 : i64} {
  func.func @subnet_kernel(%arg0: i32, %arg1: memref<8x64xf32, #tpu.memory_space<vmem>>, %arg2: memref<64x128xf32, #tpu.memory_space<vmem>>, %arg3: memref<1x128xf32, #tpu.memory_space<vmem>>, %arg4: memref<128x32xf32, #tpu.memory_space<vmem>>, %arg5: memref<1x32xf32, #tpu.memory_space<vmem>>, %arg6: memref<8x32xf32, #tpu.memory_space<vmem>>) attributes {dimension_semantics = [#tpu.dimension_semantics<parallel>], iteration_bounds = array<i64: 1>, scalar_prefetch = 0 : i64, scratch_operands = 0 : i64, tpu.core_type = #tpu.core_type<tc>, window_params = [{transform_indices = @transform_0, window_bounds = array<i64: 8, 64>}, {pipeline_mode = #tpu.pipeline_mode<synchronous>, transform_indices = @transform_1, window_bounds = array<i64: 64, 128>}, {pipeline_mode = #tpu.pipeline_mode<synchronous>, transform_indices = @transform_2, window_bounds = array<i64: 1, 128>}, {pipeline_mode = #tpu.pipeline_mode<synchronous>, transform_indices = @transform_3, window_bounds = array<i64: 128, 32>}, {pipeline_mode = #tpu.pipeline_mode<synchronous>, transform_indices = @transform_4, window_bounds = array<i64: 1, 32>}, {transform_indices = @transform_5, window_bounds = array<i64: 8, 32>}]} {
    %c0 = arith.constant 0 : index
    %c0_0 = arith.constant 0 : index
    %0 = vector.load %arg1[%c0, %c0_0] : memref<8x64xf32, #tpu.memory_space<vmem>>, vector<8x64xf32>
    %c0_1 = arith.constant 0 : index
    %c0_2 = arith.constant 0 : index
    %1 = vector.load %arg2[%c0_1, %c0_2] : memref<64x128xf32, #tpu.memory_space<vmem>>, vector<64x128xf32>
    %cst = arith.constant dense<0.000000e+00> : vector<8x128xf32>
    %2 = tpu.matmul %0, %1, %cst {dimension_numbers = #tpu.dot_dimension_numbers<[1], [0], [0], [1], [0, 0, 1, 1], [], []>} : vector<8x64xf32>, vector<64x128xf32>, vector<8x128xf32> -> vector<8x128xf32>
    %c0_3 = arith.constant 0 : index
    %c0_4 = arith.constant 0 : index
    %3 = vector.load %arg3[%c0_3, %c0_4] : memref<1x128xf32, #tpu.memory_space<vmem>>, vector<1x128xf32>
    %4 = vector.broadcast %3 : vector<1x128xf32> to vector<8x128xf32>
    %5 = arith.addf %2, %4 : vector<8x128xf32>
    %cst_5 = arith.constant 0.000000e+00 : f32
    %6 = vector.broadcast %cst_5 : f32 to vector<8x128xf32>
    %7 = arith.maximumf %5, %6 : vector<8x128xf32>
    %c0_6 = arith.constant 0 : index
    %c0_7 = arith.constant 0 : index
    %8 = vector.load %arg4[%c0_6, %c0_7] : memref<128x32xf32, #tpu.memory_space<vmem>>, vector<128x32xf32>
    %cst_8 = arith.constant dense<0.000000e+00> : vector<8x32xf32>
    %9 = tpu.matmul %7, %8, %cst_8 {dimension_numbers = #tpu.dot_dimension_numbers<[1], [0], [0], [1], [0, 0, 1, 1], [], []>} : vector<8x128xf32>, vector<128x32xf32>, vector<8x32xf32> -> vector<8x32xf32>
    %c0_9 = arith.constant 0 : index
    %c0_10 = arith.constant 0 : index
    %10 = vector.load %arg5[%c0_9, %c0_10] : memref<1x32xf32, #tpu.memory_space<vmem>>, vector<1x32xf32>
    %11 = vector.broadcast %10 : vector<1x32xf32> to vector<8x32xf32>
    %12 = arith.addf %9, %11 : vector<8x32xf32>
    %cst_11 = arith.constant 0.000000e+00 : f32
    %13 = vector.broadcast %cst_11 : f32 to vector<8x32xf32>
    %14 = arith.maximumf %12, %13 : vector<8x32xf32>
    %c0_12 = arith.constant 0 : index
    %c0_13 = arith.constant 0 : index
    %15 = vector.load %arg6[%c0_12, %c0_13] : memref<8x32xf32, #tpu.memory_space<vmem>>, vector<8x32xf32>
    tpu.vector_store %arg6[%c0_12, %c0_13], %14 {strides = array<i32>} : memref<8x32xf32, #tpu.memory_space<vmem>>, vector<8x32xf32>,
    return
  }
  func.func @transform_0(%arg0: i32) -> (i32, i32) {
    %c0_i32 = arith.constant 0 : i32
    %c0_i32_0 = arith.constant 0 : i32
    return %arg0, %c0_i32 : i32, i32
  }
  func.func @transform_1(%arg0: i32) -> (i32, i32) {
    %c0_i32 = arith.constant 0 : i32
    %c0_i32_0 = arith.constant 0 : i32
    %c0_i32_1 = arith.constant 0 : i32
    return %c0_i32, %c0_i32_0 : i32, i32
  }
  func.func @transform_2(%arg0: i32) -> (i32, i32) {
    %c0_i32 = arith.constant 0 : i32
    %c0_i32_0 = arith.constant 0 : i32
    %c0_i32_1 = arith.constant 0 : i32
    return %c0_i32, %c0_i32_0 : i32, i32
  }
  func.func @transform_3(%arg0: i32) -> (i32, i32) {
    %c0_i32 = arith.constant 0 : i32
    %c0_i32_0 = arith.constant 0 : i32
    %c0_i32_1 = arith.constant 0 : i32
    return %c0_i32, %c0_i32_0 : i32, i32
  }
  func.func @transform_4(%arg0: i32) -> (i32, i32) {
    %c0_i32 = arith.constant 0 : i32
    %c0_i32_0 = arith.constant 0 : i32
    %c0_i32_1 = arith.constant 0 : i32
    return %c0_i32, %c0_i32_0 : i32, i32
  }
  func.func @transform_5(%arg0: i32) -> (i32, i32) {
    %c0_i32 = arith.constant 0 : i32
    %c0_i32_0 = arith.constant 0 : i32
    return %arg0, %c0_i32 : i32, i32
  }
}

</mosaic_0001>

<llo_original>
// kernel: tpu_custom_call.1
$region0: #{tpu_custom_call.1}
  #allocation0 [shape = 'u32[]', space=smem, size = 0x4, offset = 0x4, fixed_abs, tag = 'smem constant byte address 0x4 - core index']
  #allocation1 [shape = 'u32[144,128]{1,0:T(1,128)}', space=vmem, size = 0x12000, scoped, tag = 'internal scratch']
  %s0 = inlined_call_operand.vmem [shape: f32[8,64], index: 0, kind: input, shape index: {}]
  %s1 = inlined_call_operand.vmem [shape: f32[64,128], index: 1, kind: input, shape index: {}]
  %s2 = inlined_call_operand.vmem [shape: f32[1,128], index: 2, kind: input, shape index: {}]
  %s3 = inlined_call_operand.vmem [shape: f32[128,32], index: 3, kind: input, shape index: {}]
  %s4 = inlined_call_operand.vmem [shape: f32[1,32], index: 4, kind: input, shape index: {}]
  %s5 = inlined_call_operand.hbm [shape: f32[8,32], index: 5, kind: output, shape index: {}]
  %s6 = sld [smem:[#allocation0]]
  $region30: #{tpu_custom_call.1} parent=0
    _
  %s8 = ssub.s32 1, %s6
  %s9 = scalar_select 0, %s8, %s6
  $region1: #{tpu_custom_call.1} parent=0
    #allocation2 [shape = 'u8[4096]{0}', space=vmem, size = 0x1000, scoped, tag = 'output window, operand 0, single buffered']
    #allocation3 [shape = 's32[1]{0}', space=sflag, size = 0x4, scoped, tag = 'scoped memory for tpu_custom_call.1']
    %10 = vsyncpa [#allocation3], 0
    // Predicated region
    $region2: #{tpu_custom_call.1} parent=1 // pred_check
      _
    $region3: #{tpu_custom_call.1} parent=1 // pred_check_branch
      %12 = sbr.rel (0) target = $region5
    $region4: #{tpu_custom_call.1} parent=1 // pred_region
      _
    $region5: #{tpu_custom_call.1} parent=1 // pred_fallthru
      _
    // Predicated region
    $region6: #{tpu_custom_call.1} parent=1 // pred_check
      _
    $region7: #{tpu_custom_call.1} parent=1 // pred_check_branch
      %14 = sbr.rel (0) target = $region9
    $region8: #{tpu_custom_call.1} parent=1 // pred_region
      _
    $region9: #{tpu_custom_call.1} parent=1 // pred_fallthru
      _
    // Predicated region
    $region10: #{tpu_custom_call.1} parent=1 // pred_check
      _
    $region11: #{tpu_custom_call.1} parent=1 // pred_check_branch
      %16 = sbr.rel (0) target = $region13
    $region12: #{tpu_custom_call.1} parent=1 // pred_region
      _
    $region13: #{tpu_custom_call.1} parent=1 // pred_fallthru
      _
    // Predicated region
    $region14: #{tpu_custom_call.1} parent=1 // pred_check
      _
    $region15: #{tpu_custom_call.1} parent=1 // pred_check_branch
      %18 = sbr.rel (0) target = $region17
    $region16: #{tpu_custom_call.1} parent=1 // pred_region
      _
    $region17: #{tpu_custom_call.1} parent=1 // pred_fallthru
      _
    // Predicated region
    $region18: #{tpu_custom_call.1} parent=1 // pred_check
      _
    $region19: #{tpu_custom_call.1} parent=1 // pred_check_branch
      %20 = sbr.rel (0) target = $region21
    $region20: #{tpu_custom_call.1} parent=1 // pred_region
      _
    $region21: #{tpu_custom_call.1} parent=1 // pred_fallthru
      _
    %v21 = vld [vmem:[%s0] sm:$0xff]
    %v22 = vld [vmem:[%s1] sm:$0xff]
    %v23 = vld [vmem:[%s1 + $0x8] sm:$0xff]
    %v24 = vld [vmem:[%s1 + $0x10] sm:$0xff]
    %v25 = vld [vmem:[%s1 + $0x18] sm:$0xff]
    %v26 = vld [vmem:[%s1 + $0x20] sm:$0xff]
    %v27 = vld [vmem:[%s1 + $0x28] sm:$0xff]
    %v28 = vld [vmem:[%s1 + $0x30] sm:$0xff]
    %v29 = vld [vmem:[%s1 + $0x38] sm:$0xff]
    %v30 = vld [vmem:[%s2] sm:$0x1]
    %v32 = vlaneseq
    %v33 = vshrl.u32 %v32, 7
    %v34 = vsub.s32 0, %v33
    %v35 = vrot.slane %v30, %v34
    %vm37 = vcmask 523264
    %v39 = vsel %vm37, %v21, 0
    %41 = vmatprep.subr.mxu0 0.0
    %42 = vmatpush1.msra.mxu0 %v22
    %43 = vmatprep.subr.mxu0 0.0
    %44 = vmatpush1.msra.mxu0 %v23
    %45 = vmatprep.subr.mxu0 0.0
    %46 = vmatpush1.msra.mxu0 %v24
    %47 = vmatprep.subr.mxu0 0.0
    %48 = vmatpush1.msra.mxu0 %v25
    %49 = vmatprep.subr.mxu0 0.0
    %50 = vmatpush1.msra.mxu0 %v26
    %51 = vmatprep.subr.mxu0 0.0
    %52 = vmatpush1.msra.mxu0 %v27
    %53 = vmatprep.subr.mxu0 0.0
    %54 = vmatpush1.msra.mxu0 %v28
    %55 = vmatprep.subr.mxu0 0.0
    %56 = vmatpush1.msra.mxu0 %v29
    %57 = vmatprep.subr.mxu0 0.0
    %58 = vmatpush1.msra.mxu0 0.0
    %59 = vmatprep.subr.mxu0 0.0
    %60 = vmatpush1.msra.mxu0 0.0
    %61 = vmatprep.subr.mxu0 0.0
    %62 = vmatpush1.msra.mxu0 0.0
    %63 = vmatprep.subr.mxu0 0.0
    %64 = vmatpush1.msra.mxu0 0.0
    %65 = vmatprep.subr.mxu0 0.0
    %66 = vmatpush1.msra.mxu0 0.0
    %67 = vmatprep.subr.mxu0 0.0
    %68 = vmatpush1.msra.mxu0 0.0
    %69 = vmatprep.subr.mxu0 0.0
    %70 = vmatpush1.msra.mxu0 0.0
    %71 = vmatprep.subr.mxu0 0.0
    %72 = vmatpush1.msra.mxu0 0.0
    %73 = vmatprep.subr.mxu0 0.0
    %74 = vmatpush1.msra.mxu0 0.0
    %75 = vmatprep.subr.mxu0 0.0
    %76 = vmatpush1.msra.mxu0 0.0
    %77 = vmatprep.subr.mxu0 0.0
    %78 = vmatpush1.msra.mxu0 0.0
    %79 = vmatprep.subr.mxu0 0.0
    %80 = vmatpush1.msra.mxu0 0.0
    %81 = vmatprep.subr.mxu0 0.0
    %82 = vmatpush1.msra.mxu0 0.0
    %83 = vmatprep.subr.mxu0 0.0
    %84 = vmatpush1.msra.mxu0 0.0
    %85 = vmatprep.subr.mxu0 0.0
    %86 = vmatpush1.msra.mxu0 0.0
    %87 = vmatprep.subr.mxu0 0.0
    %88 = vmatpush1.msra.mxu0 0.0
    %89 = vmatprep.subr.mxu0 0.0
    %90 = vmatpush1.msra.mxu0 0.0
    %91 = vmatprep.subr.mxu0 0.0
    %92 = vmatpush1.msra.mxu0 0.0
    %93 = vmatprep.subr.mxu0 0.0
    %94 = vmatpush1.msra.mxu0 0.0
    %95 = vmatprep.subr.mxu0 0.0
    %96 = vmatpush1.msra.mxu0 0.0
    %97 = vmatprep.subr.mxu0 0.0
    %98 = vmatpush1.msra.mxu0 0.0
    %99 = vmatprep.subr.mxu0 0.0
    %100 = vmatpush1.msra.mxu0 0.0
    %101 = vmatprep.subr.mxu0 0.0
    %102 = vmatpush1.msra.mxu0 0.0
    %103 = vmatprep.subr.mxu0 0.0
    %104 = vmatpush1.msra.mxu0 0.0
    %105 = vmatprep.mubr.f32.mxu0 0.0
    %106 = vmatmul.mubr.f32.gmra.mrb[0].mxu0 %v39
    %v107 = vpop.f32.mrb[0].mxu0
    %v108 = vadd.f32 %v35, %v107
    %v109 = vpop.f32.mrb[0].mxu0
    %110 = vdwg.mxu0
    %v111 = vmax.f32 %v108, 0.0
    %v112 = vld [vmem:[%s3] sm:$0xff]
    %v113 = vld [vmem:[%s3 + $0x8] sm:$0xff]
    %v114 = vld [vmem:[%s3 + $0x10] sm:$0xff]
    %v115 = vld [vmem:[%s3 + $0x18] sm:$0xff]
    %v116 = vld [vmem:[%s3 + $0x20] sm:$0xff]
    %v117 = vld [vmem:[%s3 + $0x28] sm:$0xff]
    %v118 = vld [vmem:[%s3 + $0x30] sm:$0xff]
    %v119 = vld [vmem:[%s3 + $0x38] sm:$0xff]
    %v120 = vld [vmem:[%s3 + $0x40] sm:$0xff]
    %v121 = vld [vmem:[%s3 + $0x48] sm:$0xff]
    %v122 = vld [vmem:[%s3 + $0x50] sm:$0xff]
    %v123 = vld [vmem:[%s3 + $0x58] sm:$0xff]
    %v124 = vld [vmem:[%s3 + $0x60] sm:$0xff]
    %v125 = vld [vmem:[%s3 + $0x68] sm:$0xff]
    %v126 = vld [vmem:[%s3 + $0x70] sm:$0xff]
    %v127 = vld [vmem:[%s3 + $0x78] sm:$0xff]
    %v128 = vld [vmem:[%s4] sm:$0x1]
    %v130 = vlaneseq
    %v131 = vshrl.u32 %v130, 7
    %v132 = vsub.s32 0, %v131
    %v133 = vrot.slane %v128, %v132
    %135 = vmatprep.subr.mxu0 0.0
    %136 = vmatpush1.msra.mxu0 %v112
    %137 = vmatprep.subr.mxu0 0.0
    %138 = vmatpush1.msra.mxu0 %v113
    %139 = vmatprep.subr.mxu0 0.0
    %140 = vmatpush1.msra.mxu0 %v114
    %141 = vmatprep.subr.mxu0 0.0
    %142 = vmatpush1.msra.mxu0 %v115
    %143 = vmatprep.subr.mxu0 0.0
    %144 = vmatpush1.msra.mxu0 %v116
    %145 = vmatprep.subr.mxu0 0.0
    %146 = vmatpush1.msra.mxu0 %v117
    %147 = vmatprep.subr.mxu0 0.0
    %148 = vmatpush1.msra.mxu0 %v118
    %149 = vmatprep.subr.mxu0 0.0
    %150 = vmatpush1.msra.mxu0 %v119
    %151 = vmatprep.subr.mxu0 0.0
    %152 = vmatpush1.msra.mxu0 %v120
    %153 = vmatprep.subr.mxu0 0.0
    %154 = vmatpush1.msra.mxu0 %v121
    %155 = vmatprep.subr.mxu0 0.0
    %156 = vmatpush1.msra.mxu0 %v122
    %157 = vmatprep.subr.mxu0 0.0
    %158 = vmatpush1.msra.mxu0 %v123
    %159 = vmatprep.subr.mxu0 0.0
    %160 = vmatpush1.msra.mxu0 %v124
    %161 = vmatprep.subr.mxu0 0.0
    %162 = vmatpush1.msra.mxu0 %v125
    %163 = vmatprep.subr.mxu0 0.0
    %164 = vmatpush1.msra.mxu0 %v126
    %165 = vmatprep.subr.mxu0 0.0
    %166 = vmatpush1.msra.mxu0 %v127
    %167 = vmatprep.subr.mxu0 0.0
    %168 = vmatpush1.msra.mxu0 0.0
    %169 = vmatprep.subr.mxu0 0.0
    %170 = vmatpush1.msra.mxu0 0.0
    %171 = vmatprep.subr.mxu0 0.0
    %172 = vmatpush1.msra.mxu0 0.0
    %173 = vmatprep.subr.mxu0 0.0
    %174 = vmatpush1.msra.mxu0 0.0
    %175 = vmatprep.subr.mxu0 0.0
    %176 = vmatpush1.msra.mxu0 0.0
    %177 = vmatprep.subr.mxu0 0.0
    %178 = vmatpush1.msra.mxu0 0.0
    %179 = vmatprep.subr.mxu0 0.0
    %180 = vmatpush1.msra.mxu0 0.0
    %181 = vmatprep.subr.mxu0 0.0
    %182 = vmatpush1.msra.mxu0 0.0
    %183 = vmatprep.subr.mxu0 0.0
    %184 = vmatpush1.msra.mxu0 0.0
    %185 = vmatprep.subr.mxu0 0.0
    %186 = vmatpush1.msra.mxu0 0.0
    %187 = vmatprep.subr.mxu0 0.0
    %188 = vmatpush1.msra.mxu0 0.0
    %189 = vmatprep.subr.mxu0 0.0
    %190 = vmatpush1.msra.mxu0 0.0
    %191 = vmatprep.subr.mxu0 0.0
    %192 = vmatpush1.msra.mxu0 0.0
    %193 = vmatprep.subr.mxu0 0.0
    %194 = vmatpush1.msra.mxu0 0.0
    %195 = vmatprep.subr.mxu0 0.0
    %196 = vmatpush1.msra.mxu0 0.0
    %197 = vmatprep.subr.mxu0 0.0
    %198 = vmatpush1.msra.mxu0 0.0
    %199 = vmatprep.mubr.f32.mxu0 0.0
    %200 = vmatmul.mubr.f32.gmra.mrb[0].mxu0 %v111
    %v201 = vpop.f32.mrb[0].mxu0
    %v202 = vadd.f32 %v133, %v201
    %v203 = vpop.f32.mrb[0].mxu0
    %204 = vdwg.mxu0
    %v205 = vmax.f32 %v202, 0.0
    %vm206 = vcmask 261120
    %207 = vst.msk [vmem:[#allocation2] sm:$0xff] %vm206, %v205
    // Predicated region
    $region22: #{tpu_custom_call.1} parent=1 // pred_check
      _
    $region23: #{tpu_custom_call.1} parent=1 // pred_check_branch
      %209 = sbr.rel (0) target = $region25
    $region24: #{tpu_custom_call.1} parent=1 // pred_region
      %s211 = ssub.s32 128, 128
      %212 = vsyncadd [#allocation3], %s211
      %s214 = sshll.u32 [#allocation2], 4
      %s215 = int_to_ptr.vmem [resolvable:$true] %s214
      %217 = dma.vmem_to_hbm [thread:$0]  %s215, 128, %s5, [#allocation3]
    $region25: #{tpu_custom_call.1} parent=1 // pred_fallthru
      _
    // Predicated region
    $region26: #{tpu_custom_call.1} parent=1 // pred_check
      _
    $region27: #{tpu_custom_call.1} parent=1 // pred_check_branch
      %219 = sbr.rel (0) target = $region29
    $region28: #{tpu_custom_call.1} parent=1 // pred_region
      %220 = dma.done [#allocation3], 128
    $region29: #{tpu_custom_call.1} parent=1 // pred_fallthru
      _
    %221 = vsyncpa [#allocation3], 1

</llo_original>
